<compile_context>
chip_gen: v5e
topology: v5e:2x2
jax: 0.10.0
libtpu: 0.0.40
codegen_flags: <defaults>
</compile_context>

<pallas_src>
import functools

import jax
import jax.numpy as jnp
from jax.experimental import pallas as pl
from jax.experimental.pallas import tpu as pltpu

IGNORE_INDEX = -100


def _ce_kernel(logits_ref, tgt_ref, sum_ref, cnt_ref, loss_acc, cnt_acc, *,
               ignore_index):
    p = pl.program_id(1)

    @pl.when(p == 0)
    def _():
        loss_acc[...] = jnp.zeros_like(loss_acc)
        cnt_acc[...] = jnp.zeros_like(cnt_acc)

    x = logits_ref[0].astype(jnp.float32)     # (C, TILE): classes x pixels
    t = tgt_ref[0].astype(jnp.int32)          # (1, TILE)

    # numerically-stable log-sum-exp over the class (sublane) axis
    m = jnp.max(x, axis=0, keepdims=True)                               # (1, TILE)
    lse = jnp.log(jnp.sum(jnp.exp(x - m), axis=0, keepdims=True)) + m   # (1, TILE)

    # gather target-class logit via one-hot mask (no dynamic gather on TPU).
    # NOTE: out-of-range (non-ignore) targets silently give loss = lse instead
    # of raising like PyTorch.
    class_ids = jax.lax.broadcasted_iota(jnp.int32, x.shape, 0)         # (C, TILE)
    onehot = (class_ids == t).astype(jnp.float32)
    tgt_logit = jnp.sum(x * onehot, axis=0, keepdims=True)              # (1, TILE)

    valid = (t != ignore_index).astype(jnp.float32)                     # (1, TILE)

    # lane-shaped partial accumulation; no per-step cross-lane reduce
    loss_acc[...] += (lse - tgt_logit) * valid
    cnt_acc[...] += valid

    @pl.when(p == pl.num_programs(1) - 1)
    def _():
        # single cross-lane reduce per batch element, written to (1,1) output
        sum_ref[0] = jnp.sum(loss_acc[...], axis=1, keepdims=True)
        cnt_ref[0] = jnp.sum(cnt_acc[...], axis=1, keepdims=True)


def _round_up(x, m):
    return ((x + m - 1) // m) * m


def _pick_tile(hw, c, itemsize, max_tile=2048, vmem_budget=12 * 1024 * 1024):
    """Largest lane tile (multiple of 128) whose double-buffered logits fit the
    VMEM budget; prefers a tile that divides hw so no padding pass is needed."""
    cap = min(max_tile, vmem_budget // (2 * c * itemsize))
    cap = max(128, (cap // 128) * 128)
    if hw % 128 == 0:
        best, t = 128, 128
        while t <= min(cap, hw):
            if hw % t == 0:
                best = t
            t += 128
        return best, hw
    tile = min(cap, _round_up(hw, 128))
    return tile, _round_up(hw, tile)


def cross_entropy_loss(inputs, target, *, ignore_index=IGNORE_INDEX):
    """inputs: [B, C, H, W] float logits; target: [B, H, W] int class ids.

    Returns a float32 scalar (mean CE over non-ignored pixels), matching
    torch.nn.CrossEntropyLoss(reduction='mean', ignore_index=-100).
    (If every pixel is ignored the result is NaN, same as PyTorch.)
    """
    B, C, H, W = inputs.shape
    assert target.shape == (B, H, W)
    hw = H * W

    logits = inputs.reshape(B, C, hw)                    # native layout, no transpose
    tgt = target.reshape(B, 1, hw).astype(jnp.int32)

    tile_hw, hw_pad = _pick_tile(hw, C, inputs.dtype.itemsize)
    if hw_pad != hw:
        logits = jnp.pad(logits, ((0, 0), (0, 0), (0, hw_pad - hw)))
        tgt = jnp.pad(tgt, ((0, 0), (0, 0), (0, hw_pad - hw)),
                      constant_values=ignore_index)      # padded pixels ignored

    num_tiles = hw_pad // tile_hw
    kernel = functools.partial(_ce_kernel, ignore_index=ignore_index)

    sums, cnts = pl.pallas_call(
        kernel,
        out_shape=(jax.ShapeDtypeStruct((B, 1, 1), jnp.float32),
                   jax.ShapeDtypeStruct((B, 1, 1), jnp.float32)),
        grid_spec=pltpu.PrefetchScalarGridSpec(
            num_scalar_prefetch=0,
            grid=(B, num_tiles),
            in_specs=[
                pl.BlockSpec((1, C, tile_hw), lambda b, p: (b, 0, p)),
                pl.BlockSpec((1, 1, tile_hw), lambda b, p: (b, 0, p)),
            ],
            out_specs=[
                pl.BlockSpec((1, 1, 1), lambda b, p: (b, 0, 0)),
                pl.BlockSpec((1, 1, 1), lambda b, p: (b, 0, 0)),
            ],
            scratch_shapes=[
                pltpu.VMEM((1, tile_hw), jnp.float32),   # per-lane loss partials
                pltpu.VMEM((1, tile_hw), jnp.float32),   # per-lane valid counts
            ],
        ),
        compiler_params=pltpu.CompilerParams(
            dimension_semantics=("parallel", "arbitrary"),  # B across cores (v7x)
            vmem_limit_bytes=32 * 1024 * 1024,
        ),
    )(logits, tgt)

    # reduction='mean' with weight=None: sum(loss) / #valid
    return jnp.sum(sums) / jnp.sum(cnts)


def _reference(inputs, target, ignore_index=IGNORE_INDEX):
    B, C, H, W = inputs.shape
    logits = jnp.transpose(inputs, (0, 2, 3, 1)).reshape(-1, C).astype(jnp.float32)
    tgt = target.reshape(-1).astype(jnp.int32)
    logz = jax.nn.logsumexp(logits, axis=-1)
    tgt_clamped = jnp.clip(tgt, 0, C - 1)
    picked = jnp.take_along_axis(logits, tgt_clamped[:, None], axis=-1)[:, 0]
    valid = (tgt != ignore_index).astype(jnp.float32)
    loss = (logz - picked) * valid
    return jnp.sum(loss) / jnp.sum(valid)


if __name__ == "__main__":
    key = jax.random.PRNGKey(0)
    k_logits, k_tgt = jax.random.split(key)

    B, C, H, W = 2, 4, 16, 16
    x = jax.random.normal(k_logits, (B, C, H, W), dtype=jnp.float32)
    t = jax.random.randint(k_tgt, (B, H, W), 0, C, dtype=jnp.int32)
    # sprinkle a few ignore_index labels to exercise masking
    t = t.at[0, 0, :4].set(IGNORE_INDEX)

    loss = jax.block_until_ready(cross_entropy_loss(x, t))
    ref = jax.block_until_ready(_reference(x, t))

    assert jnp.allclose(loss, ref, rtol=1e-5, atol=1e-5), (loss, ref)
    print("KERNEL_OK")
</pallas_src>

<mosaic_0001>
module attributes {stable_mosaic.version = 11 : i64} {
  func.func @_ce_kernel(%arg0: i32, %arg1: i32, %arg2: memref<1x4x256xf32, #tpu.memory_space<vmem>>, %arg3: memref<1x1x256xi32, #tpu.memory_space<vmem>>, %arg4: memref<1x1x1xf32, #tpu.memory_space<vmem>>, %arg5: memref<1x1x1xf32, #tpu.memory_space<vmem>>, %arg6: memref<1x256xf32, #tpu.memory_space<vmem>>, %arg7: memref<1x256xf32, #tpu.memory_space<vmem>>) attributes {dimension_semantics = [#tpu.dimension_semantics<parallel>, #tpu.dimension_semantics<arbitrary>], iteration_bounds = array<i64: 2, 1>, scalar_prefetch = 0 : i64, scratch_operands = 2 : i64, tpu.core_type = #tpu.core_type<tc>, window_params = [{transform_indices = @transform_0, window_bounds = array<i64: 1, 4, 256>}, {transform_indices = @transform_1, window_bounds = array<i64: 1, 1, 256>}, {transform_indices = @transform_2, window_bounds = array<i64: 1, 1, 1>}, {transform_indices = @transform_3, window_bounds = array<i64: 1, 1, 1>}]} {
    %c0_i32 = arith.constant 0 : i32
    %0 = arith.cmpi eq, %arg1, %c0_i32 : i32
    %1 = arith.extui %0 : i1 to i32
    %c0_i32_0 = arith.constant 0 : i32
    %2 = arith.cmpi ne, %1, %c0_i32_0 : i32
    scf.if %2 {
      %cst_18 = arith.constant 0.000000e+00 : f32
      %39 = vector.broadcast %cst_18 : f32 to vector<1x256xf32>
      %c0_19 = arith.constant 0 : index
      %c0_20 = arith.constant 0 : index
      %40 = vector.load %arg6[%c0_19, %c0_20] : memref<1x256xf32, #tpu.memory_space<vmem>>, vector<1x256xf32>
      tpu.vector_store %arg6[%c0_19, %c0_20], %39 {strides = array<i32>} : memref<1x256xf32, #tpu.memory_space<vmem>>, vector<1x256xf32>,
      %cst_21 = arith.constant 0.000000e+00 : f32
      %41 = vector.broadcast %cst_21 : f32 to vector<1x256xf32>
      %c0_22 = arith.constant 0 : index
      %c0_23 = arith.constant 0 : index
      %42 = vector.load %arg7[%c0_22, %c0_23] : memref<1x256xf32, #tpu.memory_space<vmem>>, vector<1x256xf32>
      tpu.vector_store %arg7[%c0_22, %c0_23], %41 {strides = array<i32>} : memref<1x256xf32, #tpu.memory_space<vmem>>, vector<1x256xf32>,
    } else {
    }
    %c0 = arith.constant 0 : index
    %c0_1 = arith.constant 0 : index
    %c0_2 = arith.constant 0 : index
    %3 = vector.load %arg2[%c0, %c0_1, %c0_2] : memref<1x4x256xf32, #tpu.memory_space<vmem>>, vector<1x4x256xf32>
    %4 = vector.shape_cast %3 : vector<1x4x256xf32> to vector<4x256xf32>
    %c0_3 = arith.constant 0 : index
    %c0_4 = arith.constant 0 : index
    %c0_5 = arith.constant 0 : index
    %5 = vector.load %arg3[%c0_3, %c0_4, %c0_5] : memref<1x1x256xi32, #tpu.memory_space<vmem>>, vector<1x1x256xi32>
    %6 = vector.shape_cast %5 : vector<1x1x256xi32> to vector<1x256xi32>
    %cst = arith.constant dense<0xFF800000> : vector<256xf32>
    %7 = vector.multi_reduction <maximumf>, %4, %cst [0] : vector<4x256xf32> to vector<256xf32>
    %8 = vector.shape_cast %7 : vector<256xf32> to vector<1x256xf32>
    %9 = vector.broadcast %8 : vector<1x256xf32> to vector<4x256xf32>
    %10 = arith.subf %4, %9 : vector<4x256xf32>
    %11 = math.exp %10 : vector<4x256xf32>
    %cst_6 = arith.constant dense<0.000000e+00> : vector<256xf32>
    %12 = vector.multi_reduction <add>, %11, %cst_6 [0] : vector<4x256xf32> to vector<256xf32>
    %13 = vector.shape_cast %12 : vector<256xf32> to vector<1x256xf32>
    %14 = math.log %13 : vector<1x256xf32>
    %15 = arith.addf %14, %8 : vector<1x256xf32>
    %16 = tpu.iota {dimensions = array<i32: 0>} : vector<4x256xi32>
    %17 = vector.broadcast %6 : vector<1x256xi32> to vector<4x256xi32>
    %18 = arith.cmpi eq, %16, %17 : vector<4x256xi32>
    %19 = arith.extui %18 : vector<4x256xi1> to vector<4x256xi32>
    %20 = arith.sitofp %19 : vector<4x256xi32> to vector<4x256xf32>
    %21 = arith.mulf %4, %20 : vector<4x256xf32>
    %cst_7 = arith.constant dense<0.000000e+00> : vector<256xf32>
    %22 = vector.multi_reduction <add>, %21, %cst_7 [0] : vector<4x256xf32> to vector<256xf32>
    %23 = vector.shape_cast %22 : vector<256xf32> to vector<1x256xf32>
    %c-100_i32 = arith.constant -100 : i32
    %24 = vector.broadcast %c-100_i32 : i32 to vector<1x256xi32>
    %25 = arith.cmpi ne, %6, %24 : vector<1x256xi32>
    %26 = arith.extui %25 : vector<1x256xi1> to vector<1x256xi32>
    %27 = arith.sitofp %26 : vector<1x256xi32> to vector<1x256xf32>
    %c0_8 = arith.constant 0 : index
    %c0_9 = arith.constant 0 : index
    %28 = vector.load %arg6[%c0_8, %c0_9] : memref<1x256xf32, #tpu.memory_space<vmem>>, vector<1x256xf32>
    %29 = arith.subf %15, %23 : vector<1x256xf32>
    %30 = arith.mulf %29, %27 : vector<1x256xf32>
    %31 = arith.addf %28, %30 : vector<1x256xf32>
    %c0_10 = arith.constant 0 : index
    %c0_11 = arith.constant 0 : index
    %32 = vector.load %arg6[%c0_10, %c0_11] : memref<1x256xf32, #tpu.memory_space<vmem>>, vector<1x256xf32>
    tpu.vector_store %arg6[%c0_10, %c0_11], %31 {strides = array<i32>} : memref<1x256xf32, #tpu.memory_space<vmem>>, vector<1x256xf32>,
    %c0_12 = arith.constant 0 : index
    %c0_13 = arith.constant 0 : index
    %33 = vector.load %arg7[%c0_12, %c0_13] : memref<1x256xf32, #tpu.memory_space<vmem>>, vector<1x256xf32>
    %34 = arith.addf %33, %27 : vector<1x256xf32>
    %c0_14 = arith.constant 0 : index
    %c0_15 = arith.constant 0 : index
    %35 = vector.load %arg7[%c0_14, %c0_15] : memref<1x256xf32, #tpu.memory_space<vmem>>, vector<1x256xf32>
    tpu.vector_store %arg7[%c0_14, %c0_15], %34 {strides = array<i32>} : memref<1x256xf32, #tpu.memory_space<vmem>>, vector<1x256xf32>,
    %c0_i32_16 = arith.constant 0 : i32
    %36 = arith.cmpi eq, %arg1, %c0_i32_16 : i32
    %37 = arith.extui %36 : i1 to i32
    %c0_i32_17 = arith.constant 0 : i32
    %38 = arith.cmpi ne, %37, %c0_i32_17 : i32
    scf.if %38 {
      %c0_18 = arith.constant 0 : index
      %c0_19 = arith.constant 0 : index
      %39 = vector.load %arg6[%c0_18, %c0_19] : memref<1x256xf32, #tpu.memory_space<vmem>>, vector<1x256xf32>
      %cst_20 = arith.constant dense<0.000000e+00> : vector<1xf32>
      %40 = vector.multi_reduction <add>, %39, %cst_20 [1] : vector<1x256xf32> to vector<1xf32>
      %41 = vector.shape_cast %40 : vector<1xf32> to vector<1x1xf32>
      %c0_21 = arith.constant 0 : index
      %c0_22 = arith.constant 0 : index
      %c0_23 = arith.constant 0 : index
      %42 = vector.load %arg4[%c0_21, %c0_22, %c0_23] : memref<1x1x1xf32, #tpu.memory_space<vmem>>, vector<1x1x1xf32>
      %43 = vector.shape_cast %42 : vector<1x1x1xf32> to vector<1x1xf32>
      %44 = vector.shape_cast %41 : vector<1x1xf32> to vector<1x1x1xf32>
      tpu.vector_store %arg4[%c0_21, %c0_22, %c0_23], %44 {strides = array<i32>} : memref<1x1x1xf32, #tpu.memory_space<vmem>>, vector<1x1x1xf32>,
      %c0_24 = arith.constant 0 : index
      %c0_25 = arith.constant 0 : index
      %45 = vector.load %arg7[%c0_24, %c0_25] : memref<1x256xf32, #tpu.memory_space<vmem>>, vector<1x256xf32>
      %cst_26 = arith.constant dense<0.000000e+00> : vector<1xf32>
      %46 = vector.multi_reduction <add>, %45, %cst_26 [1] : vector<1x256xf32> to vector<1xf32>
      %47 = vector.shape_cast %46 : vector<1xf32> to vector<1x1xf32>
      %c0_27 = arith.constant 0 : index
      %c0_28 = arith.constant 0 : index
      %c0_29 = arith.constant 0 : index
      %48 = vector.load %arg5[%c0_27, %c0_28, %c0_29] : memref<1x1x1xf32, #tpu.memory_space<vmem>>, vector<1x1x1xf32>
      %49 = vector.shape_cast %48 : vector<1x1x1xf32> to vector<1x1xf32>
      %50 = vector.shape_cast %47 : vector<1x1xf32> to vector<1x1x1xf32>
      tpu.vector_store %arg5[%c0_27, %c0_28, %c0_29], %50 {strides = array<i32>} : memref<1x1x1xf32, #tpu.memory_space<vmem>>, vector<1x1x1xf32>,
    } else {
    }
    return
  }
  func.func @transform_0(%arg0: i32, %arg1: i32) -> (i32, i32, i32) {
    %c0_i32 = arith.constant 0 : i32
    %c0_i32_0 = arith.constant 0 : i32
    return %arg0, %c0_i32, %arg1 : i32, i32, i32
  }
  func.func @transform_1(%arg0: i32, %arg1: i32) -> (i32, i32, i32) {
    %c0_i32 = arith.constant 0 : i32
    %c0_i32_0 = arith.constant 0 : i32
    return %arg0, %c0_i32, %arg1 : i32, i32, i32
  }
  func.func @transform_2(%arg0: i32, %arg1: i32) -> (i32, i32, i32) {
    %c0_i32 = arith.constant 0 : i32
    %c0_i32_0 = arith.constant 0 : i32
    %c0_i32_1 = arith.constant 0 : i32
    return %arg0, %c0_i32, %c0_i32_0 : i32, i32, i32
  }
  func.func @transform_3(%arg0: i32, %arg1: i32) -> (i32, i32, i32) {
    %c0_i32 = arith.constant 0 : i32
    %c0_i32_0 = arith.constant 0 : i32
    %c0_i32_1 = arith.constant 0 : i32
    return %arg0, %c0_i32, %c0_i32_0 : i32, i32, i32
  }
}

</mosaic_0001>

<llo_original>
// kernel: tpu_custom_call.1
$region0: #{tpu_custom_call.1}
  #allocation0 [shape = 'u32[]', space=smem, size = 0x4, offset = 0x4, fixed_abs, tag = 'smem constant byte address 0x4 - core index']
  #allocation1 [shape = 'u32[72,128]{1,0:T(1,128)}', space=vmem, size = 0x9000, scoped, tag = 'internal scratch']
  #allocation2 [shape = 'f32[1,256]{1,0:T(1,128)}', space=vmem, size = 0x400, scoped, tag = 'scratch operand']
  #allocation3 [shape = 'f32[1,256]{1,0:T(1,128)}', space=vmem, size = 0x400, scoped, tag = 'scratch operand']
  %s0 = inlined_call_operand.hbm [shape: f32[2,4,256], index: 0, kind: input, shape index: {}]
  %s1 = inlined_call_operand.hbm [shape: s32[2,1,256], index: 1, kind: input, shape index: {}]
  %s2 = inlined_call_operand.vmem [shape: f32[2,1,1], index: 2, kind: output, shape index: {0}]
  %s3 = inlined_call_operand.vmem [shape: f32[2,1,1], index: 3, kind: output, shape index: {1}]
  %4 = xla_tuple %s2, %s3
  %s5 = sld [smem:[#allocation0]]
  $region65: #{tpu_custom_call.1} parent=0
    _
  %s7 = ssub.s32 1, %s5
  %s8 = scalar_select 0, %s7, %s5
  $region1: #{tpu_custom_call.1} parent=0
    #allocation4 [shape = 'u8[8192]{0}', space=vmem, size = 0x2000, scoped, tag = 'input window, operand 0']
    #allocation5 [shape = 's32[2]{0}', space=sflag, size = 0x8, scoped, tag = 'scoped memory for tpu_custom_call.1']
    #allocation6 [shape = 'u8[2048]{0}', space=vmem, size = 0x800, scoped, tag = 'input window, operand 1']
    #allocation7 [shape = 's32[2]{0}', space=sflag, size = 0x8, scoped, tag = 'scoped memory for tpu_custom_call.1']
    %9 = vsyncpa [#allocation5], 0
    %s10 = scalar_lea.sflag [#allocation5], 1
    %11 = vsyncpa %s10, 0
    %12 = vsyncpa [#allocation7], 0
    %s13 = scalar_lea.sflag [#allocation7], 1
    %14 = vsyncpa %s13, 0
    loop: start=0, step=1, limit=4
    $region2: #{tpu_custom_call.1} parent=1 // loop_pre_header
      _
    $region3: #{tpu_custom_call.1} parent=1 // loop_header
      %s16 = sphi 0, %s20
      %p17 = scmp.ge.s32.totalorder %s16, 4
      %s23 = sphi 0, %s35
      %s24 = sphi 0, %s31
      %s25 = sphi 0, %s23
      %s26 = sphi 0, %s24
      %s27 = sphi 0, %s25
      %s28 = sphi 0, %s26
      %s40 = sphi 0, %s42
      %s43 = sphi 0, %s40
      %s44 = sphi 0, %s43
      %s60 = sphi 0, %s44
      %s68 = sphi 0, %s70
      %s71 = sphi 0, %s68
      %s72 = sphi 0, %s71
      %s88 = sphi 0, %s72
      %s94 = sphi 0, %s96
      %s97 = sphi 0, %s94
      %s98 = sphi 0, %s97
      %s114 = sphi 0, %s98
      %s120 = sphi 0, %s122
      %s123 = sphi 0, %s120
      %s124 = sphi 0, %s123
      %s140 = sphi 0, %s124
    $region4: #{tpu_custom_call.1} parent=1 // loop_header_branch
      %19 = sbr.rel (%p17) target = $region8
    $region5: #{tpu_custom_call.1} parent=1 // loop_body
      %s21 = ssub.s32 %s16, 1
      %s22 = ssub.s32 %s16, 2
      %s29 = sadd.s32 1, %s24
      %p30 = scmp.ge.s32.totalorder %s29, 1
      %s31 = scalar_select %p30, 0, %s29
      %s32 = sadd.s32 1, %s23
      %s33 = scalar_select %p30, %s32, %s23
      %p34 = scmp.ge.s32.totalorder %s33, 2
      %s35 = scalar_select %p34, 0, %s33
      %s36 = ssub.s32 %s23, %s35
      %s37 = ssub.s32 %s24, %s31
      %s38 = sor.u32 %s36, %s37
      %p39 = scmp.eq.s32.totalorder %s38, 0
      %s41 = sadd.s32 %s40, 1
      %s42 = scalar_select %p39, %s40, %s41
      %p45 = pneg %p39
      %p46 = scmp.eq.s32.totalorder %s16, 1
      %p47 = por %p45, %p46
      %p48 = scmp.ne.s32.totalorder %s40, %s43
      %p49 = scmp.eq.s32.totalorder %s16, 0
      %p50 = por %p48, %p49
      %p51 = scmp.ne.s32.totalorder %s40, %s43
      %p52 = scmp.eq.s32.totalorder %s21, 1
      %p53 = por %p51, %p52
      %p54 = scmp.ne.s32.totalorder %s43, %s44
      %p55 = scmp.eq.s32.totalorder %s21, 0
      %p56 = por %p54, %p55
      %p57 = scmp.ne.s32.totalorder %s43, %s44
      %p58 = scmp.eq.s32.totalorder %s22, 1
      %p59 = por %p57, %p58
      %p61 = scmp.ne.s32.totalorder %s44, %s60
      %p62 = scmp.eq.s32.totalorder %s22, 0
      %p63 = por %p61, %p62
      %s64 = ssub.s32 %s23, %s35
      %s65 = ssub.s32 %s24, %s31
      %s66 = sor.u32 %s64, %s65
      %p67 = scmp.eq.s32.totalorder %s66, 0
      %s69 = sadd.s32 %s68, 1
      %s70 = scalar_select %p67, %s68, %s69
      %p73 = pneg %p67
      %p74 = scmp.eq.s32.totalorder %s16, 1
      %p75 = por %p73, %p74
      %p76 = scmp.ne.s32.totalorder %s68, %s71
      %p77 = scmp.eq.s32.totalorder %s16, 0
      %p78 = por %p76, %p77
      %p79 = scmp.ne.s32.totalorder %s68, %s71
      %p80 = scmp.eq.s32.totalorder %s21, 1
      %p81 = por %p79, %p80
      %p82 = scmp.ne.s32.totalorder %s71, %s72
      %p83 = scmp.eq.s32.totalorder %s21, 0
      %p84 = por %p82, %p83
      %p85 = scmp.ne.s32.totalorder %s71, %s72
      %p86 = scmp.eq.s32.totalorder %s22, 1
      %p87 = por %p85, %p86
      %p89 = scmp.ne.s32.totalorder %s72, %s88
      %p90 = scmp.eq.s32.totalorder %s22, 0
      %p91 = por %p89, %p90
      %s92 = ssub.s32 %s23, %s35
      %p93 = scmp.eq.s32.totalorder %s92, 0
      %s95 = sadd.s32 %s94, 1
      %s96 = scalar_select %p93, %s94, %s95
      %p99 = pneg %p93
      %p100 = scmp.eq.s32.totalorder %s16, 1
      %p101 = por %p99, %p100
      %p102 = scmp.ne.s32.totalorder %s94, %s97
      %p103 = scmp.eq.s32.totalorder %s16, 0
      %p104 = por %p102, %p103
      %p105 = scmp.ne.s32.totalorder %s94, %s97
      %p106 = scmp.eq.s32.totalorder %s21, 1
      %p107 = por %p105, %p106
      %p108 = scmp.ne.s32.totalorder %s97, %s98
      %p109 = scmp.eq.s32.totalorder %s21, 0
      %p110 = por %p108, %p109
      %p111 = scmp.ne.s32.totalorder %s97, %s98
      %p112 = scmp.eq.s32.totalorder %s22, 1
      %p113 = por %p111, %p112
      %p115 = scmp.ne.s32.totalorder %s98, %s114
      %p116 = scmp.eq.s32.totalorder %s22, 0
      %p117 = por %p115, %p116
      %s118 = ssub.s32 %s23, %s35
      %p119 = scmp.eq.s32.totalorder %s118, 0
      %s121 = sadd.s32 %s120, 1
      %s122 = scalar_select %p119, %s120, %s121
      %p125 = pneg %p119
      %p126 = scmp.eq.s32.totalorder %s16, 1
      %p127 = por %p125, %p126
      %p128 = scmp.ne.s32.totalorder %s120, %s123
      %p129 = scmp.eq.s32.totalorder %s16, 0
      %p130 = por %p128, %p129
      %p131 = scmp.ne.s32.totalorder %s120, %s123
      %p132 = scmp.eq.s32.totalorder %s21, 1
      %p133 = por %p131, %p132
      %p134 = scmp.ne.s32.totalorder %s123, %s124
      %p135 = scmp.eq.s32.totalorder %s21, 0
      %p136 = por %p134, %p135
      %p137 = scmp.ne.s32.totalorder %s123, %s124
      %p138 = scmp.eq.s32.totalorder %s22, 1
      %p139 = por %p137, %p138
      %p141 = scmp.ne.s32.totalorder %s124, %s140
      %p142 = scmp.eq.s32.totalorder %s22, 0
      %p143 = por %p141, %p142
      %p144 = scmp.le.s32.totalorder 1, %s16
      %p145 = scmp.lt.s32.totalorder %s16, 3
      %p146 = pnand %p144, %p145
      %p147 = pneg %p146
      // Predicated region
      $region9: #{tpu_custom_call.1} parent=5 // pred_check
        _
      $region10: #{tpu_custom_call.1} parent=5 // pred_check_branch
        %149 = sbr.rel (%p146) target = $region12
      $region11: #{tpu_custom_call.1} parent=5 // pred_region
        %s150 = ssub.s32 %s16, 1
      $region12: #{tpu_custom_call.1} parent=5 // pred_fallthru
        _
      %p151 = scmp.lt.s32.totalorder %s16, 2
      // Predicated region
      $region13: #{tpu_custom_call.1} parent=5 // pred_check
        %p152 = pneg %p151
      $region14: #{tpu_custom_call.1} parent=5 // pred_check_branch
        %154 = sbr.rel (%p152) target = $region16
      $region15: #{tpu_custom_call.1} parent=5 // pred_region
        // Predicated region
        $region17: #{tpu_custom_call.1} parent=15 // pred_check
          %p155 = pneg %p50
        $region18: #{tpu_custom_call.1} parent=15 // pred_check_branch
          %157 = sbr.rel (%p155) target = $region20
        $region19: #{tpu_custom_call.1} parent=15 // pred_region
          %s158 = sand.u32 %s40, 1
          %s159 = scalar_lea.sflag [#allocation5], %s158
          %s160 = sand.u32 %s40, 1
          %s161 = smul.addr %s160, 8
          %s162 = scalar_lea.vmem [#allocation4], %s161
          %s163 = smul.u32 2, %s24
          %165 = vsyncadd %s159, 0
          %s166 = smul.addr %s23, 2
          %s167 = sadd.s32 %s163, %s166
          %s168 = smul.addr %s167, 4
          %s169 = scalar_lea.hbm %s0, %s168
          %s171 = sshll.u32 %s169, 4
          %s172 = int_to_ptr.hbm [resolvable:$true] %s171
          %s173 = sshll.u32 %s162, 4
          %s174 = int_to_ptr.vmem [resolvable:$true] %s173
          %176 = dma.hbm_to_vmem [thread:$0]  %s172, 128, %s174, %s159
        $region20: #{tpu_custom_call.1} parent=15 // pred_fallthru
          _
        // Predicated region
        $region21: #{tpu_custom_call.1} parent=15 // pred_check
          %p177 = pneg %p78
        $region22: #{tpu_custom_call.1} parent=15 // pred_check_branch
          %179 = sbr.rel (%p177) target = $region24
        $region23: #{tpu_custom_call.1} parent=15 // pred_region
          %s180 = sand.u32 %s68, 1
          %s181 = scalar_lea.sflag [#allocation7], %s180
          %s182 = sand.u32 %s68, 1
          %s183 = smul.addr %s182, 2
          %s184 = scalar_lea.vmem [#allocation6], %s183
          %s185 = smul.u32 2, %s24
          %187 = vsyncadd %s181, 0
          %s188 = smul.addr %s23, 2
          %s189 = sadd.s32 %s185, %s188
          %s190 = scalar_lea.hbm %s1, %s189
          %s192 = sshll.u32 %s190, 4
          %s193 = int_to_ptr.hbm [resolvable:$true] %s192
          %s194 = sshll.u32 %s184, 4
          %s195 = int_to_ptr.vmem [resolvable:$true] %s194
          %197 = dma.hbm_to_vmem [thread:$0]  %s193, 32, %s195, %s181
        $region24: #{tpu_custom_call.1} parent=15 // pred_fallthru
          _
      $region16: #{tpu_custom_call.1} parent=5 // pred_fallthru
        _
      %p198 = scmp.le.s32.totalorder 1, %s16
      %p199 = scmp.lt.s32.totalorder %s16, 3
      %p200 = pnand %p198, %p199
      %p201 = pneg %p200
      // Predicated region
      $region25: #{tpu_custom_call.1} parent=5 // pred_check
        _
      $region26: #{tpu_custom_call.1} parent=5 // pred_check_branch
        %203 = sbr.rel (%p200) target = $region28
      $region27: #{tpu_custom_call.1} parent=5 // pred_region
        %s204 = ssub.s32 %s16, 1
        %s205 = sand.u32 %s43, 1
        %s206 = scalar_lea.sflag [#allocation5], %s205
        %s207 = sand.u32 %s43, 1
        %s208 = smul.addr %s207, 8
        %s209 = scalar_lea.vmem [#allocation4], %s208
        // Predicated region
        $region29: #{tpu_custom_call.1} parent=27 // pred_check
          %p210 = pneg %p56
        $region30: #{tpu_custom_call.1} parent=27 // pred_check_branch
          %212 = sbr.rel (%p210) target = $region32
        $region31: #{tpu_custom_call.1} parent=27 // pred_region
          %214 = dma.done %s206, 128
        $region32: #{tpu_custom_call.1} parent=27 // pred_fallthru
          _
        %s215 = sand.u32 %s71, 1
        %s216 = scalar_lea.sflag [#allocation7], %s215
        %s217 = sand.u32 %s71, 1
        %s218 = smul.addr %s217, 2
        %s219 = scalar_lea.vmem [#allocation6], %s218
        // Predicated region
        $region33: #{tpu_custom_call.1} parent=27 // pred_check
          %p220 = pneg %p84
        $region34: #{tpu_custom_call.1} parent=27 // pred_check_branch
          %222 = sbr.rel (%p220) target = $region36
        $region35: #{tpu_custom_call.1} parent=27 // pred_region
          %224 = dma.done %s216, 32
        $region36: #{tpu_custom_call.1} parent=27 // pred_fallthru
          _
        %s225 = sand.u32 %s43, 1
        %s226 = scalar_lea.sflag [#allocation5], %s225
        %s227 = sand.u32 %s43, 1
        %s228 = smul.addr %s227, 8
        %s229 = scalar_lea.vmem [#allocation4], %s228
        %p230 = pneg %p56
        %p231 = pneg %p53
        %s232 = sand.u32 %s71, 1
        %s233 = scalar_lea.sflag [#allocation7], %s232
        %s234 = sand.u32 %s71, 1
        %s235 = smul.addr %s234, 2
        %s236 = scalar_lea.vmem [#allocation6], %s235
        %p237 = pneg %p84
        %p238 = pneg %p81
        %p239 = pneg %p110
        %p240 = pneg %p107
        %p241 = scmp.lt.s32.totalorder %s25, 1
        %s242 = scalar_select %p241, %s25, 1
        %s243 = scalar_lea.vmem %s2, %s242
        %p244 = pneg %p136
        %p245 = pneg %p133
        %p246 = scmp.lt.s32.totalorder %s25, 1
        %s247 = scalar_select %p246, %s25, 1
        %s248 = scalar_lea.vmem %s3, %s247
        %s249 = smul.u32 2, %s26
        %s250 = smul.u32 2, %s26
        %p251 = scmp.lt.s32.totalorder %s25, 1
        %s252 = scalar_select %p251, %s25, 1
        %s253 = scalar_lea.vmem %s2, %s252
        %p254 = scmp.lt.s32.totalorder %s25, 1
        %s255 = scalar_select %p254, %s25, 1
        %s256 = scalar_lea.vmem %s3, %s255
        %p257 = scmp.eq.s32.totalorder %s26, 0
        // Predicated region
        $region37: #{tpu_custom_call.1} parent=27 // pred_check
          %p258 = pneg %p257
        $region38: #{tpu_custom_call.1} parent=27 // pred_check_branch
          %260 = sbr.rel (%p258) target = $region40
        $region39: #{tpu_custom_call.1} parent=27 // pred_region
          %v261 = vlaneseq
          %vm262 = vcmp.ge.s32.totalorder %v261, 0
          %vm263 = vcmp.lt.s32.totalorder %v261, 256
          %vm264 = vmand %vm262, %vm263
          %265 = vst.msk [vmem:[#allocation2] sm:$0x3] %vm264, 0.0
          %266 = vst.msk [vmem:[#allocation3] sm:$0x3] %vm264, 0.0
        $region40: #{tpu_custom_call.1} parent=27 // pred_fallthru
          _
        %v267 = vld [vmem:[%s209] sm:$0xff]
        %v268 = vld [vmem:[%s219] sm:$0x3]
        %270 = vst [vmem:[#allocation1] ss:$2 sm:$0xff] %v267
        %v271 = vld.sshfl [vmem:[#allocation1] sm:$0xff pattern:$0x75316420]
        %v272 = vld.sshfl [vmem:[#allocation1 + $0x8] sm:$0xff pattern:$0x75316420]
        %vm275 = vcmask 1043456
        %v276 = vsel %vm275, %v271, -inf
        %v277 = vrot.slane %v276, 4
        %v278 = vmax.f32 %v276, %v277
        %v279 = vrot.slane %v278, 2
        %v280 = vmax.f32 %v278, %v279
        %v281 = vrot.slane %v280, 1
        %v282 = vmax.f32 %v280, %v281
        %v283 = vsel %vm275, %v272, -inf
        %v284 = vrot.slane %v283, 4
        %v285 = vmax.f32 %v283, %v284
        %v286 = vrot.slane %v285, 2
        %v287 = vmax.f32 %v285, %v286
        %v288 = vrot.slane %v287, 1
        %v289 = vmax.f32 %v287, %v288
        %v292 = vrot.slane %v289, 4
        %v293 = vsel %vm275, %v282, %v292
        %v295 = vsub.f32 %v267, %v293
        %v296 = vmul.f32 %v295, 1.442695
        %v297 = vpow.pop %v296
        %299 = vst [vmem:[#allocation1] ss:$2 sm:$0xff] %v297
        %v300 = vld.sshfl [vmem:[#allocation1] sm:$0xff pattern:$0x75316420]
        %v301 = vld.sshfl [vmem:[#allocation1 + $0x8] sm:$0xff pattern:$0x75316420]
        %v304 = vsel %vm275, %v300, 0.0
        %v305 = vrot.slane %v304, 4
        %v306 = vadd.f32 %v304, %v305
        %v307 = vrot.slane %v306, 2
        %v308 = vadd.f32 %v306, %v307
        %v309 = vrot.slane %v308, 1
        %v310 = vadd.f32 %v308, %v309
        %v311 = vsel %vm275, %v301, 0.0
        %v312 = vrot.slane %v311, 4
        %v313 = vadd.f32 %v311, %v312
        %v314 = vrot.slane %v313, 2
        %v315 = vadd.f32 %v313, %v314
        %v316 = vrot.slane %v315, 1
        %v317 = vadd.f32 %v315, %v316
        %v318 = vlog2.pop %v310
        %v319 = vmul.f32 %v318, 0.6931472
        %v320 = vlog2.pop %v317
        %v321 = vmul.f32 %v320, 0.6931472
        %v322 = vadd.f32 %v319, %v282
        %v323 = vadd.f32 %v321, %v289
        %v324 = vlaneseq
        %v325 = vshrl.u32 %v324, 7
        %v326 = vperm.slane %v268, 0
        %v327 = vperm.slane %v268, 1
        %vm328 = vcmp.eq.s32.totalorder %v325, %v326
        %vm329 = vcmp.eq.s32.totalorder %v325, %v327
        %v330 = vsel %vm328, 1, 0
        %v331 = vsel %vm329, 1, 0
        %v332 = vcvt.s32.f32 %v330
        %v333 = vcvt.s32.f32 %v331
        %v336 = vrot.slane %v333, 4
        %v337 = vsel %vm275, %v332, %v336
        %v339 = vmul.f32 %v267, %v337
        %341 = vst [vmem:[#allocation1] ss:$2 sm:$0xff] %v339
        %v342 = vld.sshfl [vmem:[#allocation1] sm:$0xff pattern:$0x75316420]
        %v343 = vld.sshfl [vmem:[#allocation1 + $0x8] sm:$0xff pattern:$0x75316420]
        %v346 = vsel %vm275, %v342, 0.0
        %v347 = vrot.slane %v346, 4
        %v348 = vadd.f32 %v346, %v347
        %v349 = vrot.slane %v348, 2
        %v350 = vadd.f32 %v348, %v349
        %v351 = vrot.slane %v350, 1
        %v352 = vadd.f32 %v350, %v351
        %v353 = vsel %vm275, %v343, 0.0
        %v354 = vrot.slane %v353, 4
        %v355 = vadd.f32 %v353, %v354
        %v356 = vrot.slane %v355, 2
        %v357 = vadd.f32 %v355, %v356
        %v358 = vrot.slane %v357, 1
        %v359 = vadd.f32 %v357, %v358
        %vm360 = vcmp.ne.s32.totalorder %v268, 4294967196
        %v361 = vsel %vm360, 1, 0
        %v362 = vcvt.s32.f32 %v361
        %v363 = vld [vmem:[#allocation2] sm:$0x3]
        %v364 = vsub.f32 %v322, %v352
        %v365 = vsub.f32 %v323, %v359
        %v367 = vperm.slane %v362, 0
        %v368 = vperm.slane %v362, 1
        %v371 = vmul.f32 %v364, %v367
        %v372 = vmul.f32 %v365, %v368
        %v375 = vrot.slane %v372, 7
        %vm376 = vcmask 1040384
        %v377 = vsel %vm376, %v371, %v375
        %v379 = vadd.f32 %v363, %v377
        %v380 = vlaneseq
        %vm381 = vcmp.ge.s32.totalorder %v380, 0
        %vm382 = vcmp.lt.s32.totalorder %v380, 256
        %vm383 = vmand %vm381, %vm382
        %384 = vst.msk [vmem:[#allocation2] sm:$0x3] %vm383, %v379
        %v385 = vld [vmem:[#allocation3] sm:$0x3]
        %v386 = vadd.f32 %v385, %v362
        %387 = vst.msk [vmem:[#allocation3] sm:$0x3] %vm383, %v386
        // Predicated region
        $region41: #{tpu_custom_call.1} parent=27 // pred_check
          %p388 = pneg %p257
        $region42: #{tpu_custom_call.1} parent=27 // pred_check_branch
          %390 = sbr.rel (%p388) target = $region44
        $region43: #{tpu_custom_call.1} parent=27 // pred_region
          %v391 = vld [vmem:[#allocation2] sm:$0x3]
          %v393 = vperm.slane %v391, 0
          %v394 = vperm.slane %v391, 1
          %v397 = vsel %vm376, %v393, 0.0
          %v398 = vsel %vm376, %v394, 0.0
          %v399 = vadd.f32 %v397, %v398
          %400 = vadd.xlane.f32.xlu0 %v399
          %v401 = vpop.xlane.xlu0 %400
          %vm402 = vcmask 0
          %403 = vst.msk [vmem:[%s253] sm:$0x1] %vm402, %v401
          %v404 = vld [vmem:[#allocation3] sm:$0x3]
          %v406 = vperm.slane %v404, 0
          %v407 = vperm.slane %v404, 1
          %v410 = vsel %vm376, %v406, 0.0
          %v411 = vsel %vm376, %v407, 0.0
          %v412 = vadd.f32 %v410, %v411
          %413 = vadd.xlane.f32.xlu0 %v412
          %v414 = vpop.xlane.xlu0 %413
          %415 = vst.msk [vmem:[%s256] sm:$0x1] %vm402, %v414
        $region44: #{tpu_custom_call.1} parent=27 // pred_fallthru
          _
        %p416 = scmp.lt.s32.totalorder %s25, 1
        %s417 = scalar_select %p416, %s25, 1
        %s418 = scalar_lea.vmem %s2, %s417
        %p419 = scmp.lt.s32.totalorder %s25, 1
        %s420 = scalar_select %p419, %s25, 1
        %s421 = scalar_lea.vmem %s3, %s420
        // Predicated region
        $region45: #{tpu_custom_call.1} parent=27 // pred_check
          %p422 = pneg %p107
        $region46: #{tpu_custom_call.1} parent=27 // pred_check_branch
          %424 = sbr.rel (%p422) target = $region48
        $region47: #{tpu_custom_call.1} parent=27 // pred_region
          _
        $region48: #{tpu_custom_call.1} parent=27 // pred_fallthru
          _
        // Predicated region
        $region49: #{tpu_custom_call.1} parent=27 // pred_check
          %p425 = pneg %p133
        $region50: #{tpu_custom_call.1} parent=27 // pred_check_branch
          %427 = sbr.rel (%p425) target = $region52
        $region51: #{tpu_custom_call.1} parent=27 // pred_region
          _
        $region52: #{tpu_custom_call.1} parent=27 // pred_fallthru
          _
      $region28: #{tpu_custom_call.1} parent=5 // pred_fallthru
        _
      %p428 = scmp.le.s32.totalorder 2, %s16
      // Predicated region
      $region53: #{tpu_custom_call.1} parent=5 // pred_check
        %p429 = pneg %p428
      $region54: #{tpu_custom_call.1} parent=5 // pred_check_branch
        %431 = sbr.rel (%p429) target = $region56
      $region55: #{tpu_custom_call.1} parent=5 // pred_region
        %s432 = ssub.s32 %s16, 2
        // Predicated region
        $region57: #{tpu_custom_call.1} parent=55 // pred_check
          %p433 = pneg %p113
        $region58: #{tpu_custom_call.1} parent=55 // pred_check_branch
          %435 = sbr.rel (%p433) target = $region60
        $region59: #{tpu_custom_call.1} parent=55 // pred_region
          %p436 = scmp.lt.s32.totalorder %s27, 1
          %s437 = scalar_select %p436, %s27, 1
          %s438 = scalar_lea.vmem %s2, %s437
        $region60: #{tpu_custom_call.1} parent=55 // pred_fallthru
          _
        // Predicated region
        $region61: #{tpu_custom_call.1} parent=55 // pred_check
          %p439 = pneg %p139
        $region62: #{tpu_custom_call.1} parent=55 // pred_check_branch
          %441 = sbr.rel (%p439) target = $region64
        $region63: #{tpu_custom_call.1} parent=55 // pred_region
          %p442 = scmp.lt.s32.totalorder %s27, 1
          %s443 = scalar_select %p442, %s27, 1
          %s444 = scalar_lea.vmem %s3, %s443
        $region64: #{tpu_custom_call.1} parent=55 // pred_fallthru
          _
      $region56: #{tpu_custom_call.1} parent=5 // pred_fallthru
        _
    $region6: #{tpu_custom_call.1} parent=1 // loop_footer
      %s20 = sadd.s32 1, %s16
    $region7: #{tpu_custom_call.1} parent=1 // loop_footer_branch
      %15 = sbr.rel target = $region3
    $region8: #{tpu_custom_call.1} parent=1 // loop_exit
      _
    %445 = vsyncpa [#allocation5], 1
    %s446 = scalar_lea.sflag [#allocation5], 1
    %447 = vsyncpa %s446, 1
    %448 = vsyncpa [#allocation7], 1
    %s449 = scalar_lea.sflag [#allocation7], 1
    %450 = vsyncpa %s449, 1

</llo_original>
